<compile_context>
chip_gen: v7x
topology: tpu7x:2x2x1
jax: 0.10.0
libtpu: 0.0.40
codegen_flags: <defaults>
</compile_context>

<pallas_src>
import functools

import jax
import jax.numpy as jnp
from jax.experimental import pallas as pl
from jax.experimental.pallas import tpu as pltpu

_LANES = 128


def _cdiv(a, b):
    return -(-a // b)


def _round_up(x, m):
    return _cdiv(x, m) * m


def _bpr_loss_kernel(p_ref, n_ref, acc_ref, *, tile_rows, total, needs_mask):
    # Grid = (parts, steps); the reduction axis (steps) is last / "arbitrary".
    s = pl.program_id(1)

    @pl.when(s == 0)
    def _():
        acc_ref[...] = jnp.zeros_like(acc_ref)

    d = p_ref[...].astype(jnp.float32) - n_ref[...].astype(jnp.float32)
    # -logsigmoid(d) = softplus(-d), numerically stable form.
    z = -d
    sp = jnp.maximum(z, 0.0) + jnp.log1p(jnp.exp(-jnp.abs(z)))

    if needs_mask:
        # Zero out zero-padded tail elements (pure VPU work, hidden under DMA).
        part = pl.program_id(0)
        base_row = (part * pl.num_programs(1) + s) * tile_rows
        row = jax.lax.broadcasted_iota(jnp.int32, (tile_rows, _LANES), 0)
        lane = jax.lax.broadcasted_iota(jnp.int32, (tile_rows, _LANES), 1)
        gidx = (base_row + row) * _LANES + lane
        sp = jnp.where(gidx < total, sp, 0.0)

    # Fold the tile down to a single vreg-shaped (8, 128) partial sum and
    # accumulate into the resident output block (no SMEM scalar round-trip,
    # no per-step cross-lane reduce).
    partial = sp.reshape(tile_rows // 8, 8, _LANES).sum(axis=0)
    acc_ref[...] += partial[None, :, :]


def bpr_loss(positives, negatives, *, tile_rows=1024, num_parts=2):
    """-mean(logsigmoid(positives - negatives)) via a Pallas TPU kernel.

    positives / negatives: arrays of identical shape (any rank, any float
    dtype; bf16 inputs halve HBM traffic). Returns a float32 scalar.
    """
    assert positives.shape == negatives.shape
    total = int(positives.size)

    rows = _cdiv(total, _LANES)
    rows8 = _round_up(rows, 8)
    tr = min(_round_up(tile_rows, 8), rows8)         # tile rows, multiple of 8
    n_tiles = _cdiv(rows8, tr)
    n_parts = num_parts if n_tiles >= num_parts else 1
    steps = _cdiv(n_tiles, n_parts)
    padded_rows = n_parts * steps * tr
    padded_total = padded_rows * _LANES
    needs_mask = padded_total != total

    p = positives.reshape(-1)
    n = negatives.reshape(-1)
    if needs_mask:
        p = jnp.pad(p, (0, padded_total - total))
        n = jnp.pad(n, (0, padded_total - total))
    p2 = p.reshape(padded_rows, _LANES)
    n2 = n.reshape(padded_rows, _LANES)

    kernel = functools.partial(
        _bpr_loss_kernel, tile_rows=tr, total=total, needs_mask=needs_mask)

    partials = pl.pallas_call(
        kernel,
        out_shape=jax.ShapeDtypeStruct((n_parts, 8, _LANES), jnp.float32),
        grid_spec=pltpu.PrefetchScalarGridSpec(
            num_scalar_prefetch=0,
            grid=(n_parts, steps),
            in_specs=[
                pl.BlockSpec((tr, _LANES), lambda pi, s: (pi * steps + s, 0)),
                pl.BlockSpec((tr, _LANES), lambda pi, s: (pi * steps + s, 0)),
            ],
            # Same block index across the "steps" axis -> the output block is
            # VMEM-resident and acts as the per-part accumulator.
            out_specs=pl.BlockSpec((1, 8, _LANES), lambda pi, s: (pi, 0, 0)),
        ),
        compiler_params=pltpu.CompilerParams(
            dimension_semantics=("parallel", "arbitrary"),
        ),
    )(p2, n2)

    # Single epilogue cross-lane reduce + mean scaling in plain JAX.
    return jnp.sum(partials) * jnp.float32(1.0 / total)


def bpr_loss_ref(positives, negatives):
    d = positives.astype(jnp.float32) - negatives.astype(jnp.float32)
    return jnp.mean(-jax.nn.log_sigmoid(d))


if __name__ == "__main__":
    key = jax.random.PRNGKey(0)

    # 1) Small, forward-consistent shape: a batch of (user, item) scores.
    #    Collapses to a single grid step.
    k1, k2, k3, k4, k5, k6 = jax.random.split(key, 6)
    p_a = jax.random.normal(k1, (32, 128), dtype=jnp.float32)
    n_a = jax.random.normal(k2, (32, 128), dtype=jnp.float32)
    out_a = jax.block_until_ready(bpr_loss(p_a, n_a))
    ref_a = bpr_loss_ref(p_a, n_a)
    assert jnp.allclose(out_a, ref_a, atol=1e-5, rtol=1e-5), (out_a, ref_a)

    # 2) Larger f32 slab: exercises multi-step pipeline + 2-part split.
    p_b = jax.random.normal(k3, (2048, 256), dtype=jnp.float32)
    n_b = jax.random.normal(k4, (2048, 256), dtype=jnp.float32)
    out_b = jax.block_until_ready(bpr_loss(p_b, n_b))
    ref_b = bpr_loss_ref(p_b, n_b)
    assert jnp.allclose(out_b, ref_b, atol=1e-5, rtol=1e-4), (out_b, ref_b)

    # 3) Ragged bf16 shape: exercises padding mask + half-bandwidth inputs.
    p_c = jax.random.normal(k5, (7, 33, 5), dtype=jnp.bfloat16)
    n_c = jax.random.normal(k6, (7, 33, 5), dtype=jnp.bfloat16)
    out_c = jax.block_until_ready(bpr_loss(p_c, n_c))
    ref_c = bpr_loss_ref(p_c, n_c)
    assert jnp.allclose(out_c, ref_c, atol=1e-5, rtol=1e-4), (out_c, ref_c)

    print("KERNEL_OK")
</pallas_src>

<mosaic_0001>
module attributes {stable_mosaic.version = 11 : i64} {
  func.func @_bpr_loss_kernel(%arg0: i32, %arg1: i32, %arg2: memref<32x128xf32, #tpu.memory_space<vmem>>, %arg3: memref<32x128xf32, #tpu.memory_space<vmem>>, %arg4: memref<1x8x128xf32, #tpu.memory_space<vmem>>) attributes {dimension_semantics = [#tpu.dimension_semantics<parallel>, #tpu.dimension_semantics<arbitrary>], iteration_bounds = array<i64: 1, 1>, scalar_prefetch = 0 : i64, scratch_operands = 0 : i64, tpu.core_type = #tpu.core_type<tc>, window_params = [{transform_indices = @transform_0, window_bounds = array<i64: 32, 128>}, {transform_indices = @transform_1, window_bounds = array<i64: 32, 128>}, {transform_indices = @transform_2, window_bounds = array<i64: 1, 8, 128>}]} {
    %c0_i32 = arith.constant 0 : i32
    %0 = arith.cmpi eq, %arg1, %c0_i32 : i32
    %1 = arith.extui %0 : i1 to i32
    %c0_i32_0 = arith.constant 0 : i32
    %2 = arith.cmpi ne, %1, %c0_i32_0 : i32
    scf.if %2 {
      %cst_13 = arith.constant 0.000000e+00 : f32
      %22 = vector.broadcast %cst_13 : f32 to vector<1x8x128xf32>
      %c0_14 = arith.constant 0 : index
      %c0_15 = arith.constant 0 : index
      %c0_16 = arith.constant 0 : index
      %23 = vector.load %arg4[%c0_14, %c0_15, %c0_16] : memref<1x8x128xf32, #tpu.memory_space<vmem>>, vector<1x8x128xf32>
      tpu.vector_store %arg4[%c0_14, %c0_15, %c0_16], %22 {strides = array<i32>} : memref<1x8x128xf32, #tpu.memory_space<vmem>>, vector<1x8x128xf32>,
    } else {
    }
    %c0 = arith.constant 0 : index
    %c0_1 = arith.constant 0 : index
    %3 = vector.load %arg2[%c0, %c0_1] : memref<32x128xf32, #tpu.memory_space<vmem>>, vector<32x128xf32>
    %c0_2 = arith.constant 0 : index
    %c0_3 = arith.constant 0 : index
    %4 = vector.load %arg3[%c0_2, %c0_3] : memref<32x128xf32, #tpu.memory_space<vmem>>, vector<32x128xf32>
    %5 = arith.subf %3, %4 : vector<32x128xf32>
    %cst = arith.constant 0.000000e+00 : f32
    %6 = vector.broadcast %cst : f32 to vector<32x128xf32>
    %7 = arith.subf %6, %5 : vector<32x128xf32>
    %cst_4 = arith.constant 0.000000e+00 : f32
    %8 = vector.broadcast %cst_4 : f32 to vector<32x128xf32>
    %9 = arith.maximumf %7, %8 : vector<32x128xf32>
    %10 = math.absf %7 : vector<32x128xf32>
    %cst_5 = arith.constant 0.000000e+00 : f32
    %11 = vector.broadcast %cst_5 : f32 to vector<32x128xf32>
    %12 = arith.subf %11, %10 : vector<32x128xf32>
    %13 = math.exp %12 : vector<32x128xf32>
    %14 = math.log1p %13 : vector<32x128xf32>
    %15 = arith.addf %9, %14 : vector<32x128xf32>
    %16 = vector.shape_cast %15 : vector<32x128xf32> to vector<4x8x128xf32>
    %cst_6 = arith.constant dense<0.000000e+00> : vector<8x128xf32>
    %17 = vector.multi_reduction <add>, %16, %cst_6 [0] : vector<4x8x128xf32> to vector<8x128xf32>
    %c0_7 = arith.constant 0 : index
    %c0_8 = arith.constant 0 : index
    %c0_9 = arith.constant 0 : index
    %18 = vector.load %arg4[%c0_7, %c0_8, %c0_9] : memref<1x8x128xf32, #tpu.memory_space<vmem>>, vector<1x8x128xf32>
    %19 = vector.shape_cast %17 : vector<8x128xf32> to vector<1x8x128xf32>
    %20 = arith.addf %18, %19 : vector<1x8x128xf32>
    %c0_10 = arith.constant 0 : index
    %c0_11 = arith.constant 0 : index
    %c0_12 = arith.constant 0 : index
    %21 = vector.load %arg4[%c0_10, %c0_11, %c0_12] : memref<1x8x128xf32, #tpu.memory_space<vmem>>, vector<1x8x128xf32>
    tpu.vector_store %arg4[%c0_10, %c0_11, %c0_12], %20 {strides = array<i32>} : memref<1x8x128xf32, #tpu.memory_space<vmem>>, vector<1x8x128xf32>,
    return
  }
  func.func @transform_0(%arg0: i32, %arg1: i32) -> (i32, i32) {
    %c1_i32 = arith.constant 1 : i32
    %0 = arith.muli %arg0, %c1_i32 : i32
    %1 = arith.addi %0, %arg1 : i32
    %c0_i32 = arith.constant 0 : i32
    %c0_i32_0 = arith.constant 0 : i32
    return %1, %c0_i32 : i32, i32
  }
  func.func @transform_1(%arg0: i32, %arg1: i32) -> (i32, i32) {
    %c1_i32 = arith.constant 1 : i32
    %0 = arith.muli %arg0, %c1_i32 : i32
    %1 = arith.addi %0, %arg1 : i32
    %c0_i32 = arith.constant 0 : i32
    %c0_i32_0 = arith.constant 0 : i32
    return %1, %c0_i32 : i32, i32
  }
  func.func @transform_2(%arg0: i32, %arg1: i32) -> (i32, i32, i32) {
    %c0_i32 = arith.constant 0 : i32
    %c0_i32_0 = arith.constant 0 : i32
    %c0_i32_1 = arith.constant 0 : i32
    return %arg0, %c0_i32, %c0_i32_0 : i32, i32, i32
  }
}

</mosaic_0001>

<llo_original>
// kernel: tpu_custom_call.1
$region0: #{tpu_custom_call.1}
  #allocation0 [shape = 'u32[]', space=smem, size = 0x4, offset = 0x4, fixed_abs, tag = 'smem constant byte address 0x4 - core index']
  #allocation1 [shape = 'u32[144,128]{1,0:T(1,128)}', space=vmem, size = 0x12000, scoped, tag = 'internal scratch']
  %s0 = inlined_call_operand.hbm [shape: f32[32,128], index: 0, kind: input, shape index: {}]
  %s1 = inlined_call_operand.hbm [shape: f32[32,128], index: 1, kind: input, shape index: {}]
  %s2 = inlined_call_operand.hbm [shape: f32[1,8,128], index: 2, kind: output, shape index: {}]
  %s3 = sld [smem:[#allocation0]]
  $region30: #{tpu_custom_call.1} parent=0
    _
  %s5 = ssub.s32 1, %s3
  %s6 = scalar_select 0, %s5, %s3
  $region1: #{tpu_custom_call.1} parent=0
    #allocation2 [shape = 'u8[16384]{0}', space=vmem, size = 0x4000, scoped, tag = 'input window, operand 0, single buffered']
    #allocation3 [shape = 's32[1]{0}', space=sflag, size = 0x4, scoped, tag = 'scoped memory for tpu_custom_call.1']
    #allocation4 [shape = 's32[1]{0}', space=sflag, size = 0x4, scoped, tag = 'scoped memory for tpu_custom_call.1']
    #allocation5 [shape = 'u8[16384]{0}', space=vmem, size = 0x4000, scoped, tag = 'input window, operand 1, single buffered']
    #allocation6 [shape = 's32[1]{0}', space=sflag, size = 0x4, scoped, tag = 'scoped memory for tpu_custom_call.1']
    #allocation7 [shape = 'u8[4096]{0}', space=vmem, size = 0x1000, scoped, tag = 'output window, operand 0, single buffered']
    %7 = vsyncpa [#allocation3], 0
    %8 = vsyncpa [#allocation6], 0
    %9 = vsyncpa [#allocation4], 0
    // Predicated region
    $region2: #{tpu_custom_call.1} parent=1 // pred_check
      _
    $region3: #{tpu_custom_call.1} parent=1 // pred_check_branch
      %11 = sbr.rel (0) target = $region5
    $region4: #{tpu_custom_call.1} parent=1 // pred_region
      %s12 = sadd.s32 0, 0
      %s13 = smul.u32 4, %s12
      %s15 = ssub.s32 512, 512
      %16 = vsyncadd [#allocation3], %s15
      %s17 = smul.addr %s13, 128
      %s18 = scalar_lea.hbm %s0, %s17
      %s19 = sshll.u32 [#allocation2], 4
      %s20 = int_to_ptr.vmem [resolvable:$true] %s19
      %25 = dma.hbm_to_vmem [thread:$0]  %s18, 512, %s20, [#allocation3], 128, 128, 8
    $region5: #{tpu_custom_call.1} parent=1 // pred_fallthru
      _
    // Predicated region
    $region6: #{tpu_custom_call.1} parent=1 // pred_check
      _
    $region7: #{tpu_custom_call.1} parent=1 // pred_check_branch
      %27 = sbr.rel (0) target = $region9
    $region8: #{tpu_custom_call.1} parent=1 // pred_region
      %s28 = sadd.s32 0, 0
      %s29 = smul.u32 4, %s28
      %s31 = ssub.s32 512, 512
      %32 = vsyncadd [#allocation6], %s31
      %s33 = smul.addr %s29, 128
      %s34 = scalar_lea.hbm %s1, %s33
      %s35 = sshll.u32 [#allocation5], 4
      %s36 = int_to_ptr.vmem [resolvable:$true] %s35
      %41 = dma.hbm_to_vmem [thread:$0]  %s34, 512, %s36, [#allocation6], 128, 128, 8
    $region9: #{tpu_custom_call.1} parent=1 // pred_fallthru
      _
    // Predicated region
    $region10: #{tpu_custom_call.1} parent=1 // pred_check
      _
    $region11: #{tpu_custom_call.1} parent=1 // pred_check_branch
      %43 = sbr.rel (0) target = $region13
    $region12: #{tpu_custom_call.1} parent=1 // pred_region
      %44 = dma.done [#allocation3], 512
    $region13: #{tpu_custom_call.1} parent=1 // pred_fallthru
      _
    // Predicated region
    $region14: #{tpu_custom_call.1} parent=1 // pred_check
      _
    $region15: #{tpu_custom_call.1} parent=1 // pred_check_branch
      %46 = sbr.rel (0) target = $region17
    $region16: #{tpu_custom_call.1} parent=1 // pred_region
      %47 = dma.done [#allocation6], 512
    $region17: #{tpu_custom_call.1} parent=1 // pred_fallthru
      _
    %s48 = sadd.s32 0, 0
    %s49 = smul.u32 4, %s48
    %s50 = sadd.s32 0, 0
    %s51 = smul.u32 4, %s50
    %p52 = scmp.eq.s32.totalorder 0, 0
    // Predicated region
    $region18: #{tpu_custom_call.1} parent=1 // pred_check
      %p53 = pneg %p52
    $region19: #{tpu_custom_call.1} parent=1 // pred_check_branch
      %55 = sbr.rel (%p53) target = $region21
    $region20: #{tpu_custom_call.1} parent=1 // pred_region
      %56 = vst [vmem:[#allocation7] sm:$0xff] 0.0
    $region21: #{tpu_custom_call.1} parent=1 // pred_fallthru
      _
    %v57 = vld [vmem:[#allocation2] sm:$0xff]
    %v58 = vld [vmem:[#allocation2 + $0x8] sm:$0xff]
    %v59 = vld [vmem:[#allocation2 + $0x10] sm:$0xff]
    %v60 = vld [vmem:[#allocation2 + $0x18] sm:$0xff]
    %v61 = vld [vmem:[#allocation5] sm:$0xff]
    %v62 = vld [vmem:[#allocation5 + $0x8] sm:$0xff]
    %v63 = vld [vmem:[#allocation5 + $0x10] sm:$0xff]
    %v64 = vld [vmem:[#allocation5 + $0x18] sm:$0xff]
    %v65 = vsub.f32 %v57, %v61
    %v66 = vsub.f32 %v58, %v62
    %v67 = vsub.f32 %v59, %v63
    %v68 = vsub.f32 %v60, %v64
    %v69 = vsub.f32 0.0, %v65
    %v70 = vsub.f32 0.0, %v66
    %v71 = vsub.f32 0.0, %v67
    %v72 = vsub.f32 0.0, %v68
    %v73 = vmax.f32 %v69, 0.0
    %v74 = vmax.f32 %v70, 0.0
    %v75 = vmax.f32 %v71, 0.0
    %v76 = vmax.f32 %v72, 0.0
    %v77 = vand.u32 2147483647, %v69
    %v78 = vand.u32 2147483647, %v70
    %v79 = vand.u32 2147483647, %v71
    %v80 = vand.u32 2147483647, %v72
    %v81 = vsub.f32 0.0, %v77
    %v82 = vsub.f32 0.0, %v78
    %v83 = vsub.f32 0.0, %v79
    %v84 = vsub.f32 0.0, %v80
    %v85 = vmul.f32 %v81, 1.442695
    %v86 = vpow.pop %v85
    %v87 = vmul.f32 %v82, 1.442695
    %v88 = vpow.pop %v87
    %v89 = vmul.f32 %v83, 1.442695
    %v90 = vpow.pop %v89
    %v91 = vmul.f32 %v84, 1.442695
    %v92 = vpow.pop %v91
    %v93 = vadd.f32 %v86, 1.0
    %v94 = vlog2.pop %v93
    %v95 = vmul.f32 %v94, 0.6931472
    %v96 = vmul.f32 -0.5, %v86
    %v97 = vadd.f32 %v96, 1.0
    %v98 = vmul.f32 %v97, %v86
    %v99 = vand.u32 2147483647, %v86
    %vm100 = vcmp.lt.f32.partialorder %v99, 0.0004427343
    %v101 = vsel %vm100, %v98, %v95
    %v102 = vadd.f32 %v88, 1.0
    %v103 = vlog2.pop %v102
    %v104 = vmul.f32 %v103, 0.6931472
    %v105 = vmul.f32 -0.5, %v88
    %v106 = vadd.f32 %v105, 1.0
    %v107 = vmul.f32 %v106, %v88
    %v108 = vand.u32 2147483647, %v88
    %vm109 = vcmp.lt.f32.partialorder %v108, 0.0004427343
    %v110 = vsel %vm109, %v107, %v104
    %v111 = vadd.f32 %v90, 1.0
    %v112 = vlog2.pop %v111
    %v113 = vmul.f32 %v112, 0.6931472
    %v114 = vmul.f32 -0.5, %v90
    %v115 = vadd.f32 %v114, 1.0
    %v116 = vmul.f32 %v115, %v90
    %v117 = vand.u32 2147483647, %v90
    %vm118 = vcmp.lt.f32.partialorder %v117, 0.0004427343
    %v119 = vsel %vm118, %v116, %v113
    %v120 = vadd.f32 %v92, 1.0
    %v121 = vlog2.pop %v120
    %v122 = vmul.f32 %v121, 0.6931472
    %v123 = vmul.f32 -0.5, %v92
    %v124 = vadd.f32 %v123, 1.0
    %v125 = vmul.f32 %v124, %v92
    %v126 = vand.u32 2147483647, %v92
    %vm127 = vcmp.lt.f32.partialorder %v126, 0.0004427343
    %v128 = vsel %vm127, %v125, %v122
    %v129 = vadd.f32 %v73, %v101
    %v130 = vadd.f32 %v74, %v110
    %v131 = vadd.f32 %v75, %v119
    %v132 = vadd.f32 %v76, %v128
    %v133 = vadd.f32 %v129, %v130
    %v134 = vadd.f32 %v133, %v131
    %v135 = vadd.f32 %v134, %v132
    %v136 = vld [vmem:[#allocation7] sm:$0xff]
    %v137 = vadd.f32 %v136, %v135
    %138 = vst [vmem:[#allocation7] sm:$0xff] %v137
    // Predicated region
    $region22: #{tpu_custom_call.1} parent=1 // pred_check
      _
    $region23: #{tpu_custom_call.1} parent=1 // pred_check_branch
      %140 = sbr.rel (0) target = $region25
    $region24: #{tpu_custom_call.1} parent=1 // pred_region
      %s142 = ssub.s32 128, 128
      %143 = vsyncadd [#allocation4], %s142
      %s145 = sshll.u32 [#allocation7], 4
      %s146 = int_to_ptr.vmem [resolvable:$true] %s145
      %148 = dma.vmem_to_hbm [thread:$0]  %s146, 128, %s2, [#allocation4]
    $region25: #{tpu_custom_call.1} parent=1 // pred_fallthru
      _
    // Predicated region
    $region26: #{tpu_custom_call.1} parent=1 // pred_check
      _
    $region27: #{tpu_custom_call.1} parent=1 // pred_check_branch
      %150 = sbr.rel (0) target = $region29
    $region28: #{tpu_custom_call.1} parent=1 // pred_region
      %151 = dma.done [#allocation4], 128
    $region29: #{tpu_custom_call.1} parent=1 // pred_fallthru
      _
    %152 = vsyncpa [#allocation3], 1
    %153 = vsyncpa [#allocation6], 1
    %154 = vsyncpa [#allocation4], 1

</llo_original>
